<compile_context>
chip_gen: v5e
topology: v5e:2x2
jax: 0.10.0
libtpu: 0.0.40
codegen_flags: <defaults>
</compile_context>

<pallas_src>
import functools
import math

import jax
import jax.numpy as jnp
from jax import lax
from jax.experimental import pallas as pl
from jax.experimental.pallas import tpu as pltpu


def _round_up(x, m):
    return (x + m - 1) // m * m


def _memory_kernel(m_ref, q_ref, o_ref, m_scr, l_scr, acc_scr, *,
                   thw_actual, t_mem):
    """One (batch, q-tile, mem-chunk) grid step.

    m_ref  : (1, D, t_mem)  bf16  memory chunk
    q_ref  : (1, D, t_hw)   bf16  query tile (pre-scaled by 1/sqrt(D))
    o_ref  : (1, D, t_hw)   f32   output tile (written on last mem chunk)
    m_scr  : (1, t_hw)      f32   running max   (online softmax)
    l_scr  : (1, t_hw)      f32   running sum
    acc_scr: (D, t_hw)      f32   running weighted sum of memory values
    """
    ki = pl.program_id(2)

    @pl.when(ki == 0)
    def _init():
        m_scr[...] = jnp.full(m_scr.shape, -jnp.inf, jnp.float32)
        l_scr[...] = jnp.zeros(l_scr.shape, jnp.float32)
        acc_scr[...] = jnp.zeros(acc_scr.shape, jnp.float32)

    m_blk = m_ref[0]                              # (D, t_mem) bf16
    q_blk = q_ref[0]                              # (D, t_hw)  bf16

    # s[k, q] = sum_d m[d, k] * q[d, q]   (contract over D; no materialized M^T)
    s = lax.dot_general(m_blk, q_blk,
                        dimension_numbers=(((0,), (0,)), ((), ())),
                        preferred_element_type=jnp.float32)     # (t_mem, t_hw)

    # Mask memory rows beyond the real T*H*W extent (lane padding) with -inf.
    row = ki * t_mem + lax.broadcasted_iota(jnp.int32, s.shape, 0)
    s = jnp.where(row < thw_actual, s, -jnp.inf)

    m_prev = m_scr[...]
    m_new = jnp.maximum(m_prev, jnp.max(s, axis=0, keepdims=True))   # (1, t_hw)
    alpha = jnp.exp(m_prev - m_new)                                  # (1, t_hw)
    p = jnp.exp(s - m_new)                                           # f32
    l_scr[...] = alpha * l_scr[...] + jnp.sum(p, axis=0, keepdims=True)
    acc_scr[...] = alpha * acc_scr[...] + jnp.dot(
        m_blk, p.astype(jnp.bfloat16), preferred_element_type=jnp.float32)
    m_scr[...] = m_new

    @pl.when(ki == pl.num_programs(2) - 1)
    def _finalize():
        inv_l = pl.reciprocal(l_scr[...], approx=True)
        o_ref[0] = (acc_scr[...] * inv_l).astype(o_ref.dtype)


def memory_read(m_in, q_in, *, block_mem=512, block_q=512):
    """Memory.forward.  m_in:[B,D,T,H,W] q_in:[B,D,H,W] -> [B,D,H,W] (f32)."""
    B, D, T, H, W = m_in.shape
    assert q_in.shape == (B, D, H, W)
    HW = H * W
    THW = T * H * W

    t_hw = min(_round_up(block_q, 128), _round_up(HW, 128))
    t_mem = min(_round_up(block_mem, 128), _round_up(THW, 128))
    hw_pad = _round_up(HW, t_hw)
    thw_pad = _round_up(THW, t_mem)

    # Flatten, fold 1/sqrt(D) into Q once, pad flattened spatial axes to lane
    # multiples, cast matmul operands to bf16 (f32 accumulation in-kernel).
    m_flat = m_in.reshape(B, D, THW)
    q_flat = q_in.reshape(B, D, HW) * jnp.float32(1.0 / math.sqrt(D))
    m_flat = jnp.pad(m_flat, ((0, 0), (0, 0), (0, thw_pad - THW)))
    q_flat = jnp.pad(q_flat, ((0, 0), (0, 0), (0, hw_pad - HW)))
    m_bf = m_flat.astype(jnp.bfloat16)
    q_bf = q_flat.astype(jnp.bfloat16)

    n_q = hw_pad // t_hw
    n_k = thw_pad // t_mem

    # VMEM budget: double-buffered bf16 inputs + f32 output + scratch + s/p tiles.
    est = (2 * D * t_mem * 2 + 2 * D * t_hw * 2 + 2 * D * t_hw * 4
           + D * t_hw * 4 + 2 * t_hw * 4 + 3 * t_mem * t_hw * 4)
    vmem_limit = int(min(max(2 * est + (2 << 20), 16 << 20), 48 << 20))

    kernel = functools.partial(_memory_kernel, thw_actual=THW, t_mem=t_mem)

    out = pl.pallas_call(
        kernel,
        out_shape=jax.ShapeDtypeStruct((B, D, hw_pad), jnp.float32),
        grid=(B, n_q, n_k),
        in_specs=[
            pl.BlockSpec((1, D, t_mem), lambda b, qi, ki: (b, 0, ki)),
            pl.BlockSpec((1, D, t_hw), lambda b, qi, ki: (b, 0, qi)),
        ],
        out_specs=pl.BlockSpec((1, D, t_hw), lambda b, qi, ki: (b, 0, qi)),
        scratch_shapes=[
            pltpu.VMEM((1, t_hw), jnp.float32),    # running max
            pltpu.VMEM((1, t_hw), jnp.float32),    # running sum
            pltpu.VMEM((D, t_hw), jnp.float32),    # output accumulator
        ],
        compiler_params=pltpu.CompilerParams(
            dimension_semantics=("parallel", "parallel", "arbitrary"),
            vmem_limit_bytes=vmem_limit),
    )(m_bf, q_bf)

    return out[:, :, :HW].reshape(B, D, H, W)


class Memory:
    """JAX/Pallas equivalent of the (parameter-free) PyTorch `Memory` module."""

    def __call__(self, m_in, q_in, **kw):
        return memory_read(m_in, q_in, **kw)


def memory_ref(m_in, q_in):
    """Pure-JAX reference with PyTorch semantics (f32)."""
    B, D, T, H, W = m_in.shape
    mi = m_in.reshape(B, D, T * H * W)
    qi = q_in.reshape(B, D, H * W)
    p = jnp.einsum('bdk,bdq->bkq', mi, qi) / math.sqrt(D)
    p = jax.nn.softmax(p, axis=1)
    mem = jnp.einsum('bdk,bkq->bdq', mi, p)
    return mem.reshape(B, D, H, W)


if __name__ == "__main__":
    key = jax.random.PRNGKey(0)
    k1, k2, k3, k4 = jax.random.split(key, 4)
    mem_mod = Memory()

    # Case 1: lane-aligned shapes, multiple memory chunks and query tiles.
    B, D, T, H, W = 2, 32, 2, 16, 16
    m_in = jax.random.normal(k1, (B, D, T, H, W), jnp.float32)
    q_in = jax.random.normal(k2, (B, D, H, W), jnp.float32)
    out = jax.block_until_ready(mem_mod(m_in, q_in, block_mem=128, block_q=128))
    ref = memory_ref(m_in, q_in)
    assert out.shape == ref.shape
    diff = (out - ref).ravel()
    max_err = float(jnp.max(jnp.abs(diff)))
    rel_err = float(jnp.linalg.norm(diff) / jnp.linalg.norm(ref.ravel()))
    assert max_err < 1e-1 and rel_err < 2e-2, (max_err, rel_err)

    # Case 2: non-lane-aligned spatial size (exercises padding + -inf masking).
    B2, D2, T2, H2, W2 = 1, 16, 2, 10, 12
    m2 = jax.random.normal(k3, (B2, D2, T2, H2, W2), jnp.float32)
    q2 = jax.random.normal(k4, (B2, D2, H2, W2), jnp.float32)
    out2 = jax.block_until_ready(mem_mod(m2, q2, block_mem=128, block_q=128))
    ref2 = memory_ref(m2, q2)
    diff2 = (out2 - ref2).ravel()
    max_err2 = float(jnp.max(jnp.abs(diff2)))
    rel_err2 = float(jnp.linalg.norm(diff2) / jnp.linalg.norm(ref2.ravel()))
    assert max_err2 < 1e-1 and rel_err2 < 2e-2, (max_err2, rel_err2)

    print("KERNEL_OK")
</pallas_src>

<mosaic_0001>
module attributes {stable_mosaic.version = 11 : i64} {
  func.func @_memory_kernel(%arg0: i32, %arg1: i32, %arg2: i32, %arg3: memref<1x32x128xbf16, #tpu.memory_space<vmem>>, %arg4: memref<1x32x128xbf16, #tpu.memory_space<vmem>>, %arg5: memref<1x32x128xf32, #tpu.memory_space<vmem>>, %arg6: memref<1x128xf32, #tpu.memory_space<vmem>>, %arg7: memref<1x128xf32, #tpu.memory_space<vmem>>, %arg8: memref<32x128xf32, #tpu.memory_space<vmem>>) attributes {dimension_semantics = [#tpu.dimension_semantics<parallel>, #tpu.dimension_semantics<parallel>, #tpu.dimension_semantics<arbitrary>], iteration_bounds = array<i64: 2, 2, 4>, scalar_prefetch = 0 : i64, scratch_operands = 3 : i64, tpu.core_type = #tpu.core_type<tc>, window_params = [{transform_indices = @transform_0, window_bounds = array<i64: 1, 32, 128>}, {transform_indices = @transform_1, window_bounds = array<i64: 1, 32, 128>}, {transform_indices = @transform_2, window_bounds = array<i64: 1, 32, 128>}]} {
    %c0_i32 = arith.constant 0 : i32
    %0 = arith.cmpi eq, %arg2, %c0_i32 : i32
    %1 = arith.extui %0 : i1 to i32
    %c0_i32_0 = arith.constant 0 : i32
    %2 = arith.cmpi ne, %1, %c0_i32_0 : i32
    scf.if %2 {
      %cst_23 = arith.constant 0xFF800000 : f32
      %42 = vector.broadcast %cst_23 : f32 to vector<1x128xf32>
      %c0_24 = arith.constant 0 : index
      %c0_25 = arith.constant 0 : index
      %43 = vector.load %arg6[%c0_24, %c0_25] : memref<1x128xf32, #tpu.memory_space<vmem>>, vector<1x128xf32>
      tpu.vector_store %arg6[%c0_24, %c0_25], %42 {strides = array<i32>} : memref<1x128xf32, #tpu.memory_space<vmem>>, vector<1x128xf32>,
      %cst_26 = arith.constant 0.000000e+00 : f32
      %44 = vector.broadcast %cst_26 : f32 to vector<1x128xf32>
      %c0_27 = arith.constant 0 : index
      %c0_28 = arith.constant 0 : index
      %45 = vector.load %arg7[%c0_27, %c0_28] : memref<1x128xf32, #tpu.memory_space<vmem>>, vector<1x128xf32>
      tpu.vector_store %arg7[%c0_27, %c0_28], %44 {strides = array<i32>} : memref<1x128xf32, #tpu.memory_space<vmem>>, vector<1x128xf32>,
      %cst_29 = arith.constant 0.000000e+00 : f32
      %46 = vector.broadcast %cst_29 : f32 to vector<32x128xf32>
      %c0_30 = arith.constant 0 : index
      %c0_31 = arith.constant 0 : index
      %47 = vector.load %arg8[%c0_30, %c0_31] : memref<32x128xf32, #tpu.memory_space<vmem>>, vector<32x128xf32>
      tpu.vector_store %arg8[%c0_30, %c0_31], %46 {strides = array<i32>} : memref<32x128xf32, #tpu.memory_space<vmem>>, vector<32x128xf32>,
    } else {
    }
    %c0 = arith.constant 0 : index
    %c0_1 = arith.constant 0 : index
    %c0_2 = arith.constant 0 : index
    %3 = vector.load %arg3[%c0, %c0_1, %c0_2] : memref<1x32x128xbf16, #tpu.memory_space<vmem>>, vector<1x32x128xbf16>
    %4 = vector.shape_cast %3 : vector<1x32x128xbf16> to vector<32x128xbf16>
    %c0_3 = arith.constant 0 : index
    %c0_4 = arith.constant 0 : index
    %c0_5 = arith.constant 0 : index
    %5 = vector.load %arg4[%c0_3, %c0_4, %c0_5] : memref<1x32x128xbf16, #tpu.memory_space<vmem>>, vector<1x32x128xbf16>
    %6 = vector.shape_cast %5 : vector<1x32x128xbf16> to vector<32x128xbf16>
    %cst = arith.constant dense<0.000000e+00> : vector<128x128xf32>
    %7 = tpu.matmul %4, %6, %cst {dimension_numbers = #tpu.dot_dimension_numbers<[0], [0], [1], [1], [0, 1, 1, 1], [], []>} : vector<32x128xbf16>, vector<32x128xbf16>, vector<128x128xf32> -> vector<128x128xf32>
    %c128_i32 = arith.constant 128 : i32
    %8 = arith.muli %arg2, %c128_i32 : i32
    %9 = tpu.iota {dimensions = array<i32: 0>} : vector<128x128xi32>
    %10 = vector.broadcast %8 : i32 to vector<128x128xi32>
    %11 = arith.addi %10, %9 : vector<128x128xi32>
    %c512_i32 = arith.constant 512 : i32
    %12 = vector.broadcast %c512_i32 : i32 to vector<128x128xi32>
    %13 = arith.cmpi slt, %11, %12 : vector<128x128xi32>
    %cst_6 = arith.constant 0xFF800000 : f32
    %14 = vector.broadcast %cst_6 : f32 to vector<128x128xf32>
    %15 = arith.select %13, %7, %14 : vector<128x128xi1>, vector<128x128xf32>
    %c0_7 = arith.constant 0 : index
    %c0_8 = arith.constant 0 : index
    %16 = vector.load %arg6[%c0_7, %c0_8] : memref<1x128xf32, #tpu.memory_space<vmem>>, vector<1x128xf32>
    %cst_9 = arith.constant dense<0xFF800000> : vector<128xf32>
    %17 = vector.multi_reduction <maximumf>, %15, %cst_9 [0] : vector<128x128xf32> to vector<128xf32>
    %18 = vector.shape_cast %17 : vector<128xf32> to vector<1x128xf32>
    %19 = arith.maximumf %16, %18 : vector<1x128xf32>
    %20 = arith.subf %16, %19 : vector<1x128xf32>
    %21 = math.exp %20 : vector<1x128xf32>
    %22 = vector.broadcast %19 : vector<1x128xf32> to vector<128x128xf32>
    %23 = arith.subf %15, %22 : vector<128x128xf32>
    %24 = math.exp %23 : vector<128x128xf32>
    %c0_10 = arith.constant 0 : index
    %c0_11 = arith.constant 0 : index
    %25 = vector.load %arg7[%c0_10, %c0_11] : memref<1x128xf32, #tpu.memory_space<vmem>>, vector<1x128xf32>
    %26 = arith.mulf %21, %25 : vector<1x128xf32>
    %cst_12 = arith.constant dense<0.000000e+00> : vector<128xf32>
    %27 = vector.multi_reduction <add>, %24, %cst_12 [0] : vector<128x128xf32> to vector<128xf32>
    %28 = vector.shape_cast %27 : vector<128xf32> to vector<1x128xf32>
    %29 = arith.addf %26, %28 : vector<1x128xf32>
    %c0_13 = arith.constant 0 : index
    %c0_14 = arith.constant 0 : index
    %30 = vector.load %arg7[%c0_13, %c0_14] : memref<1x128xf32, #tpu.memory_space<vmem>>, vector<1x128xf32>
    tpu.vector_store %arg7[%c0_13, %c0_14], %29 {strides = array<i32>} : memref<1x128xf32, #tpu.memory_space<vmem>>, vector<1x128xf32>,
    %c0_15 = arith.constant 0 : index
    %c0_16 = arith.constant 0 : index
    %31 = vector.load %arg8[%c0_15, %c0_16] : memref<32x128xf32, #tpu.memory_space<vmem>>, vector<32x128xf32>
    %32 = vector.broadcast %21 : vector<1x128xf32> to vector<32x128xf32>
    %33 = arith.mulf %32, %31 : vector<32x128xf32>
    %34 = arith.truncf %24 : vector<128x128xf32> to vector<128x128xbf16>
    %cst_17 = arith.constant dense<0.000000e+00> : vector<32x128xf32>
    %35 = tpu.matmul %4, %34, %cst_17 {dimension_numbers = #tpu.dot_dimension_numbers<[1], [0], [0], [1], [0, 0, 1, 1], [], []>} : vector<32x128xbf16>, vector<128x128xbf16>, vector<32x128xf32> -> vector<32x128xf32>
    %36 = arith.addf %33, %35 : vector<32x128xf32>
    %c0_18 = arith.constant 0 : index
    %c0_19 = arith.constant 0 : index
    %37 = vector.load %arg8[%c0_18, %c0_19] : memref<32x128xf32, #tpu.memory_space<vmem>>, vector<32x128xf32>
    tpu.vector_store %arg8[%c0_18, %c0_19], %36 {strides = array<i32>} : memref<32x128xf32, #tpu.memory_space<vmem>>, vector<32x128xf32>,
    %c0_20 = arith.constant 0 : index
    %c0_21 = arith.constant 0 : index
    %38 = vector.load %arg6[%c0_20, %c0_21] : memref<1x128xf32, #tpu.memory_space<vmem>>, vector<1x128xf32>
    tpu.vector_store %arg6[%c0_20, %c0_21], %19 {strides = array<i32>} : memref<1x128xf32, #tpu.memory_space<vmem>>, vector<1x128xf32>,
    %c3_i32 = arith.constant 3 : i32
    %39 = arith.cmpi eq, %arg2, %c3_i32 : i32
    %40 = arith.extui %39 : i1 to i32
    %c0_i32_22 = arith.constant 0 : i32
    %41 = arith.cmpi ne, %40, %c0_i32_22 : i32
    scf.if %41 {
      %c0_23 = arith.constant 0 : index
      %c0_24 = arith.constant 0 : index
      %42 = vector.load %arg7[%c0_23, %c0_24] : memref<1x128xf32, #tpu.memory_space<vmem>>, vector<1x128xf32>
      %43 = tpu.reciprocal %42 {approx = true} : vector<1x128xf32> -> vector<1x128xf32>
      %c0_25 = arith.constant 0 : index
      %c0_26 = arith.constant 0 : index
      %44 = vector.load %arg8[%c0_25, %c0_26] : memref<32x128xf32, #tpu.memory_space<vmem>>, vector<32x128xf32>
      %45 = vector.broadcast %43 : vector<1x128xf32> to vector<32x128xf32>
      %46 = arith.mulf %44, %45 : vector<32x128xf32>
      %c0_27 = arith.constant 0 : index
      %c0_28 = arith.constant 0 : index
      %c0_29 = arith.constant 0 : index
      %47 = vector.load %arg5[%c0_27, %c0_28, %c0_29] : memref<1x32x128xf32, #tpu.memory_space<vmem>>, vector<1x32x128xf32>
      %48 = vector.shape_cast %47 : vector<1x32x128xf32> to vector<32x128xf32>
      %49 = vector.shape_cast %46 : vector<32x128xf32> to vector<1x32x128xf32>
      tpu.vector_store %arg5[%c0_27, %c0_28, %c0_29], %49 {strides = array<i32>} : memref<1x32x128xf32, #tpu.memory_space<vmem>>, vector<1x32x128xf32>,
    } else {
    }
    return
  }
  func.func @transform_0(%arg0: i32, %arg1: i32, %arg2: i32) -> (i32, i32, i32) {
    %c0_i32 = arith.constant 0 : i32
    %c0_i32_0 = arith.constant 0 : i32
    return %arg0, %c0_i32, %arg2 : i32, i32, i32
  }
  func.func @transform_1(%arg0: i32, %arg1: i32, %arg2: i32) -> (i32, i32, i32) {
    %c0_i32 = arith.constant 0 : i32
    %c0_i32_0 = arith.constant 0 : i32
    return %arg0, %c0_i32, %arg1 : i32, i32, i32
  }
  func.func @transform_2(%arg0: i32, %arg1: i32, %arg2: i32) -> (i32, i32, i32) {
    %c0_i32 = arith.constant 0 : i32
    %c0_i32_0 = arith.constant 0 : i32
    return %arg0, %c0_i32, %arg1 : i32, i32, i32
  }
}

</mosaic_0001>

<llo_original>
// kernel: tpu_custom_call.1
$region0: #{tpu_custom_call.1}
  #allocation0 [shape = 'u32[]', space=smem, size = 0x4, offset = 0x4, fixed_abs, tag = 'smem constant byte address 0x4 - core index']
  #allocation1 [shape = 'u32[72,128]{1,0:T(1,128)}', space=vmem, size = 0x9000, scoped, tag = 'internal scratch']
  #allocation2 [shape = 'f32[1,128]{1,0:T(1,128)}', space=vmem, size = 0x200, scoped, tag = 'scratch operand']
  #allocation3 [shape = 'f32[1,128]{1,0:T(1,128)}', space=vmem, size = 0x200, scoped, tag = 'scratch operand']
  #allocation4 [shape = 'f32[32,128]{1,0:T(8,128)}', space=vmem, size = 0x4000, scoped, tag = 'scratch operand']
  %s0 = inlined_call_operand.hbm [shape: bf16[2,32,512], index: 0, kind: input, shape index: {}]
  %s1 = inlined_call_operand.hbm [shape: bf16[2,32,256], index: 1, kind: input, shape index: {}]
  %s2 = inlined_call_operand.hbm [shape: f32[2,32,256], index: 2, kind: output, shape index: {}]
  %s3 = sld [smem:[#allocation0]]
  $region57: #{tpu_custom_call.1} parent=0
    _
  %s5 = ssub.s32 1, %s3
  %s6 = scalar_select 0, %s5, %s3
  $region1: #{tpu_custom_call.1} parent=0
    #allocation5 [shape = 'u8[16384]{0}', space=vmem, size = 0x4000, scoped, tag = 'input window, operand 0']
    #allocation6 [shape = 's32[2]{0}', space=sflag, size = 0x8, scoped, tag = 'scoped memory for tpu_custom_call.1']
    #allocation7 [shape = 's32[2]{0}', space=sflag, size = 0x8, scoped, tag = 'scoped memory for tpu_custom_call.1']
    #allocation8 [shape = 'u8[16384]{0}', space=vmem, size = 0x4000, scoped, tag = 'input window, operand 1']
    #allocation9 [shape = 's32[2]{0}', space=sflag, size = 0x8, scoped, tag = 'scoped memory for tpu_custom_call.1']
    #allocation10 [shape = 'u8[32768]{0}', space=vmem, size = 0x8000, scoped, tag = 'output window, operand 0']
    %7 = vsyncpa [#allocation6], 0
    %s8 = scalar_lea.sflag [#allocation6], 1
    %9 = vsyncpa %s8, 0
    %10 = vsyncpa [#allocation9], 0
    %s11 = scalar_lea.sflag [#allocation9], 1
    %12 = vsyncpa %s11, 0
    %13 = vsyncpa [#allocation7], 0
    %s14 = scalar_lea.sflag [#allocation7], 1
    %15 = vsyncpa %s14, 0
    loop: start=0, step=1, limit=18
    $region2: #{tpu_custom_call.1} parent=1 // loop_pre_header
      _
    $region3: #{tpu_custom_call.1} parent=1 // loop_header
      %s17 = sphi 0, %s21
      %p18 = scmp.ge.s32.totalorder %s17, 18
      %s24 = sphi 0, %s43
      %s25 = sphi 0, %s39
      %s26 = sphi 0, %s35
      %s27 = sphi 0, %s24
      %s28 = sphi 0, %s25
      %s29 = sphi 0, %s26
      %s30 = sphi 0, %s27
      %s31 = sphi 0, %s28
      %s32 = sphi 0, %s29
      %s48 = sphi 0, %s50
      %s51 = sphi 0, %s48
      %s52 = sphi 0, %s51
      %s68 = sphi 0, %s52
      %s76 = sphi 0, %s78
      %s79 = sphi 0, %s76
      %s80 = sphi 0, %s79
      %s96 = sphi 0, %s80
      %s104 = sphi 0, %s106
      %s107 = sphi 0, %s104
      %s108 = sphi 0, %s107
      %s124 = sphi 0, %s108
    $region4: #{tpu_custom_call.1} parent=1 // loop_header_branch
      %20 = sbr.rel (%p18) target = $region8
    $region5: #{tpu_custom_call.1} parent=1 // loop_body
      %s22 = ssub.s32 %s17, 1
      %s23 = ssub.s32 %s17, 2
      %s33 = sadd.s32 1, %s26
      %p34 = scmp.ge.s32.totalorder %s33, 4
      %s35 = scalar_select %p34, 0, %s33
      %s36 = sadd.s32 1, %s25
      %s37 = scalar_select %p34, %s36, %s25
      %p38 = scmp.ge.s32.totalorder %s37, 2
      %s39 = scalar_select %p38, 0, %s37
      %s40 = sadd.s32 1, %s24
      %s41 = scalar_select %p38, %s40, %s24
      %p42 = scmp.ge.s32.totalorder %s41, 2
      %s43 = scalar_select %p42, 0, %s41
      %s44 = ssub.s32 %s24, %s43
      %s45 = ssub.s32 %s26, %s35
      %s46 = sor.u32 %s44, %s45
      %p47 = scmp.eq.s32.totalorder %s46, 0
      %s49 = sadd.s32 %s48, 1
      %s50 = scalar_select %p47, %s48, %s49
      %p53 = pneg %p47
      %p54 = scmp.eq.s32.totalorder %s17, 15
      %p55 = por %p53, %p54
      %p56 = scmp.ne.s32.totalorder %s48, %s51
      %p57 = scmp.eq.s32.totalorder %s17, 0
      %p58 = por %p56, %p57
      %p59 = scmp.ne.s32.totalorder %s48, %s51
      %p60 = scmp.eq.s32.totalorder %s22, 15
      %p61 = por %p59, %p60
      %p62 = scmp.ne.s32.totalorder %s51, %s52
      %p63 = scmp.eq.s32.totalorder %s22, 0
      %p64 = por %p62, %p63
      %p65 = scmp.ne.s32.totalorder %s51, %s52
      %p66 = scmp.eq.s32.totalorder %s23, 15
      %p67 = por %p65, %p66
      %p69 = scmp.ne.s32.totalorder %s52, %s68
      %p70 = scmp.eq.s32.totalorder %s23, 0
      %p71 = por %p69, %p70
      %s72 = ssub.s32 %s24, %s43
      %s73 = ssub.s32 %s25, %s39
      %s74 = sor.u32 %s72, %s73
      %p75 = scmp.eq.s32.totalorder %s74, 0
      %s77 = sadd.s32 %s76, 1
      %s78 = scalar_select %p75, %s76, %s77
      %p81 = pneg %p75
      %p82 = scmp.eq.s32.totalorder %s17, 15
      %p83 = por %p81, %p82
      %p84 = scmp.ne.s32.totalorder %s76, %s79
      %p85 = scmp.eq.s32.totalorder %s17, 0
      %p86 = por %p84, %p85
      %p87 = scmp.ne.s32.totalorder %s76, %s79
      %p88 = scmp.eq.s32.totalorder %s22, 15
      %p89 = por %p87, %p88
      %p90 = scmp.ne.s32.totalorder %s79, %s80
      %p91 = scmp.eq.s32.totalorder %s22, 0
      %p92 = por %p90, %p91
      %p93 = scmp.ne.s32.totalorder %s79, %s80
      %p94 = scmp.eq.s32.totalorder %s23, 15
      %p95 = por %p93, %p94
      %p97 = scmp.ne.s32.totalorder %s80, %s96
      %p98 = scmp.eq.s32.totalorder %s23, 0
      %p99 = por %p97, %p98
      %s100 = ssub.s32 %s24, %s43
      %s101 = ssub.s32 %s25, %s39
      %s102 = sor.u32 %s100, %s101
      %p103 = scmp.eq.s32.totalorder %s102, 0
      %s105 = sadd.s32 %s104, 1
      %s106 = scalar_select %p103, %s104, %s105
      %p109 = pneg %p103
      %p110 = scmp.eq.s32.totalorder %s17, 15
      %p111 = por %p109, %p110
      %p112 = scmp.ne.s32.totalorder %s104, %s107
      %p113 = scmp.eq.s32.totalorder %s17, 0
      %p114 = por %p112, %p113
      %p115 = scmp.ne.s32.totalorder %s104, %s107
      %p116 = scmp.eq.s32.totalorder %s22, 15
      %p117 = por %p115, %p116
      %p118 = scmp.ne.s32.totalorder %s107, %s108
      %p119 = scmp.eq.s32.totalorder %s22, 0
      %p120 = por %p118, %p119
      %p121 = scmp.ne.s32.totalorder %s107, %s108
      %p122 = scmp.eq.s32.totalorder %s23, 15
      %p123 = por %p121, %p122
      %p125 = scmp.ne.s32.totalorder %s108, %s124
      %p126 = scmp.eq.s32.totalorder %s23, 0
      %p127 = por %p125, %p126
      %p128 = scmp.le.s32.totalorder 1, %s17
      %p129 = scmp.lt.s32.totalorder %s17, 17
      %p130 = pnand %p128, %p129
      %p131 = pneg %p130
      // Predicated region
      $region9: #{tpu_custom_call.1} parent=5 // pred_check
        _
      $region10: #{tpu_custom_call.1} parent=5 // pred_check_branch
        %133 = sbr.rel (%p130) target = $region12
      $region11: #{tpu_custom_call.1} parent=5 // pred_region
        %s134 = ssub.s32 %s17, 1
      $region12: #{tpu_custom_call.1} parent=5 // pred_fallthru
        _
      %p135 = scmp.lt.s32.totalorder %s17, 16
      // Predicated region
      $region13: #{tpu_custom_call.1} parent=5 // pred_check
        %p136 = pneg %p135
      $region14: #{tpu_custom_call.1} parent=5 // pred_check_branch
        %138 = sbr.rel (%p136) target = $region16
      $region15: #{tpu_custom_call.1} parent=5 // pred_region
        // Predicated region
        $region17: #{tpu_custom_call.1} parent=15 // pred_check
          %p139 = pneg %p58
        $region18: #{tpu_custom_call.1} parent=15 // pred_check_branch
          %141 = sbr.rel (%p139) target = $region20
        $region19: #{tpu_custom_call.1} parent=15 // pred_region
          %s142 = sand.u32 %s48, 1
          %s143 = scalar_lea.sflag [#allocation6], %s142
          %s144 = sand.u32 %s48, 1
          %s145 = smul.addr %s144, 16
          %s146 = scalar_lea.vmem [#allocation5], %s145
          %148 = vsyncadd %s143, 0
          %s149 = smul.addr %s24, 16
          %s150 = sadd.s32 %s26, %s149
          %s151 = smul.addr %s150, 4
          %s152 = scalar_lea.hbm %s0, %s151
          %s153 = sshll.u32 %s152, 4
          %s154 = int_to_ptr.hbm [resolvable:$true] %s153
          %s155 = sshll.u32 %s146, 4
          %s156 = int_to_ptr.vmem [resolvable:$true] %s155
          %161 = dma.hbm_to_vmem [thread:$0]  %s154, 256, %s156, %s143, 256, 64, 4
        $region20: #{tpu_custom_call.1} parent=15 // pred_fallthru
          _
        // Predicated region
        $region21: #{tpu_custom_call.1} parent=15 // pred_check
          %p162 = pneg %p86
        $region22: #{tpu_custom_call.1} parent=15 // pred_check_branch
          %164 = sbr.rel (%p162) target = $region24
        $region23: #{tpu_custom_call.1} parent=15 // pred_region
          %s165 = sand.u32 %s76, 1
          %s166 = scalar_lea.sflag [#allocation9], %s165
          %s167 = sand.u32 %s76, 1
          %s168 = smul.addr %s167, 16
          %s169 = scalar_lea.vmem [#allocation8], %s168
          %171 = vsyncadd %s166, 0
          %s172 = smul.addr %s24, 8
          %s173 = sadd.s32 %s25, %s172
          %s174 = smul.addr %s173, 4
          %s175 = scalar_lea.hbm %s1, %s174
          %s176 = sshll.u32 %s175, 4
          %s177 = int_to_ptr.hbm [resolvable:$true] %s176
          %s178 = sshll.u32 %s169, 4
          %s179 = int_to_ptr.vmem [resolvable:$true] %s178
          %184 = dma.hbm_to_vmem [thread:$0]  %s177, 256, %s179, %s166, 128, 64, 4
        $region24: #{tpu_custom_call.1} parent=15 // pred_fallthru
          _
      $region16: #{tpu_custom_call.1} parent=5 // pred_fallthru
        _
      %p185 = scmp.le.s32.totalorder 1, %s17
      %p186 = scmp.lt.s32.totalorder %s17, 17
      %p187 = pnand %p185, %p186
      %p188 = pneg %p187
      // Predicated region
      $region25: #{tpu_custom_call.1} parent=5 // pred_check
        _
      $region26: #{tpu_custom_call.1} parent=5 // pred_check_branch
        %190 = sbr.rel (%p187) target = $region28
      $region27: #{tpu_custom_call.1} parent=5 // pred_region
        %s191 = ssub.s32 %s17, 1
        %s192 = sand.u32 %s51, 1
        %s193 = scalar_lea.sflag [#allocation6], %s192
        %s194 = sand.u32 %s51, 1
        %s195 = smul.addr %s194, 16
        %s196 = scalar_lea.vmem [#allocation5], %s195
        // Predicated region
        $region29: #{tpu_custom_call.1} parent=27 // pred_check
          %p197 = pneg %p64
        $region30: #{tpu_custom_call.1} parent=27 // pred_check_branch
          %199 = sbr.rel (%p197) target = $region32
        $region31: #{tpu_custom_call.1} parent=27 // pred_region
          %201 = dma.done %s193, 256
        $region32: #{tpu_custom_call.1} parent=27 // pred_fallthru
          _
        %s202 = sand.u32 %s79, 1
        %s203 = scalar_lea.sflag [#allocation9], %s202
        %s204 = sand.u32 %s79, 1
        %s205 = smul.addr %s204, 16
        %s206 = scalar_lea.vmem [#allocation8], %s205
        // Predicated region
        $region33: #{tpu_custom_call.1} parent=27 // pred_check
          %p207 = pneg %p92
        $region34: #{tpu_custom_call.1} parent=27 // pred_check_branch
          %209 = sbr.rel (%p207) target = $region36
        $region35: #{tpu_custom_call.1} parent=27 // pred_region
          %211 = dma.done %s203, 256
        $region36: #{tpu_custom_call.1} parent=27 // pred_fallthru
          _
        %s212 = sand.u32 %s51, 1
        %s213 = scalar_lea.sflag [#allocation6], %s212
        %s214 = sand.u32 %s51, 1
        %s215 = smul.addr %s214, 16
        %s216 = scalar_lea.vmem [#allocation5], %s215
        %p217 = pneg %p64
        %p218 = pneg %p61
        %s219 = sand.u32 %s79, 1
        %s220 = scalar_lea.sflag [#allocation9], %s219
        %s221 = sand.u32 %s79, 1
        %s222 = smul.addr %s221, 16
        %s223 = scalar_lea.vmem [#allocation8], %s222
        %p224 = pneg %p92
        %p225 = pneg %p89
        %p226 = pneg %p120
        %p227 = pneg %p117
        %s228 = sand.u32 %s107, 1
        %s229 = scalar_lea.sflag [#allocation7], %s228
        %s230 = sand.u32 %s107, 1
        %s231 = smul.addr %s230, 32
        %s232 = scalar_lea.vmem [#allocation10], %s231
        %p234 = scmp.eq.s32.totalorder %s29, 0
        // Predicated region
        $region37: #{tpu_custom_call.1} parent=27 // pred_check
          %p235 = pneg %p234
        $region38: #{tpu_custom_call.1} parent=27 // pred_check_branch
          %237 = sbr.rel (%p235) target = $region40
        $region39: #{tpu_custom_call.1} parent=27 // pred_region
          %238 = vst [vmem:[#allocation2] sm:$0x1] -inf
          %239 = vst [vmem:[#allocation3] sm:$0x1] 0.0
          %240 = vst [vmem:[#allocation4] sm:$0xff] 0.0
          %241 = vst [vmem:[#allocation4 + $0x8] sm:$0xff] 0.0
          %242 = vst [vmem:[#allocation4 + $0x10] sm:$0xff] 0.0
          %243 = vst [vmem:[#allocation4 + $0x18] sm:$0xff] 0.0
        $region40: #{tpu_custom_call.1} parent=27 // pred_fallthru
          _
        %v244 = vld [vmem:[%s196] sm:$0xf]
        %v245 = vld [vmem:[%s196 + $0x4] sm:$0xf]
        %v246 = vld [vmem:[%s196 + $0x8] sm:$0xf]
        %v247 = vld [vmem:[%s196 + $0xc] sm:$0xf]
        %v248 = vld [vmem:[%s206] sm:$0xf]
        %v249 = vld [vmem:[%s206 + $0x4] sm:$0xf]
        %v250 = vld [vmem:[%s206 + $0x8] sm:$0xf]
        %v251 = vld [vmem:[%s206 + $0xc] sm:$0xf]
        %v256 = vunpack.c.l.b16 %v244
        %v257 = vunpack.c.l.b16 %v245
        %v258 = vunpack.c.l.b16 %v246
        %v259 = vunpack.c.l.b16 %v247
        %v260 = vpack.c.b16 %v257, %v256
        %v261 = vpack.c.b16 %v259, %v258
        %264 = vxpose.xlu0.c.b16.start [1/8] %v260, 128
        %265 = vxpose.xlu0.c.b16.cont [2/8] %v261, 128
        %266 = vxpose.xlu0.c.b16.cont [3/8] 0, 128
        %267 = vxpose.xlu0.c.b16.cont [4/8] 0, 128
        %268 = vxpose.xlu0.c.b16.cont [5/8] 0, 128
        %269 = vxpose.xlu0.c.b16.cont [6/8] 0, 128
        %270 = vxpose.xlu0.c.b16.cont [7/8] 0, 128
        %271 = vxpose.xlu0.c.b16.end [8/8] 0, 128
        %v272 = vpop.trf.xlu0
        %v273 = vpop.trf.xlu0
        %v274 = vpop.trf.xlu0
        %v275 = vpop.trf.xlu0
        %v276 = vpop.trf.xlu0
        %v277 = vpop.trf.xlu0
        %v278 = vpop.trf.xlu0
        %v279 = vpop.trf.xlu0
        %v284 = vunpack.c.l.b16 %v248
        %v285 = vunpack.c.l.b16 %v249
        %v286 = vunpack.c.l.b16 %v250
        %v287 = vunpack.c.l.b16 %v251
        %v288 = vpack.c.b16 %v285, %v284
        %v289 = vpack.c.b16 %v287, %v286
        %vm292 = vcmask 261120
        %v294 = vsel %vm292, %v272, 0
        %v297 = vsel %vm292, %v273, 0
        %v300 = vsel %vm292, %v274, 0
        %v303 = vsel %vm292, %v275, 0
        %v306 = vsel %vm292, %v276, 0
        %v309 = vsel %vm292, %v277, 0
        %v312 = vsel %vm292, %v278, 0
        %v315 = vsel %vm292, %v279, 0
        %317 = vmatpush.bf16.msra.mxu0 0
        %318 = vmatpush.bf16.msra.mxu0 0
        %319 = vmatpush.bf16.msra.mxu0 0
        %320 = vmatpush.bf16.msra.mxu0 0
        %321 = vmatpush.bf16.msra.mxu0 0
        %322 = vmatpush.bf16.msra.mxu0 0
        %323 = vmatpush.bf16.msra.mxu0 %v289
        %324 = vmatpush.bf16.msra.mxu0 %v288
        %325 = vmatmul.bf16.gmra.mxu0 %v294
        %v326 = vpop.f32.mrf.mxu0
        %v327 = vadd.f32 0.0, %v326
        %v328 = vpop.f32.mrf.mxu0
        %v329 = vadd.f32 0.0, %v328
        %330 = vmatmul.bf16.gmra.mxu0 %v297
        %v331 = vpop.f32.mrf.mxu0
        %v332 = vadd.f32 0.0, %v331
        %v333 = vpop.f32.mrf.mxu0
        %v334 = vadd.f32 0.0, %v333
        %335 = vmatmul.bf16.gmra.mxu0 %v300
        %v336 = vpop.f32.mrf.mxu0
        %v337 = vadd.f32 0.0, %v336
        %v338 = vpop.f32.mrf.mxu0
        %v339 = vadd.f32 0.0, %v338
        %340 = vmatmul.bf16.gmra.mxu0 %v303
        %v341 = vpop.f32.mrf.mxu0
        %v342 = vadd.f32 0.0, %v341
        %v343 = vpop.f32.mrf.mxu0
        %v344 = vadd.f32 0.0, %v343
        %345 = vmatmul.bf16.gmra.mxu0 %v306
        %v346 = vpop.f32.mrf.mxu0
        %v347 = vadd.f32 0.0, %v346
        %v348 = vpop.f32.mrf.mxu0
        %v349 = vadd.f32 0.0, %v348
        %350 = vmatmul.bf16.gmra.mxu0 %v309
        %v351 = vpop.f32.mrf.mxu0
        %v352 = vadd.f32 0.0, %v351
        %v353 = vpop.f32.mrf.mxu0
        %v354 = vadd.f32 0.0, %v353
        %355 = vmatmul.bf16.gmra.mxu0 %v312
        %v356 = vpop.f32.mrf.mxu0
        %v357 = vadd.f32 0.0, %v356
        %v358 = vpop.f32.mrf.mxu0
        %v359 = vadd.f32 0.0, %v358
        %360 = vmatmul.bf16.gmra.mxu0 %v315
        %v361 = vpop.f32.mrf.mxu0
        %v362 = vadd.f32 0.0, %v361
        %v363 = vpop.f32.mrf.mxu0
        %v364 = vadd.f32 0.0, %v363
        %365 = vdwg.mxu0
        %s366 = smul.u32 %s29, 128
        %v367 = vlaneseq
        %v368 = vshrl.u32 %v367, 7
        %v369 = vadd.s32 %v368, 8
        %v370 = vadd.s32 %v368, 16
        %v371 = vadd.s32 %v368, 24
        %v372 = vadd.s32 %v368, 32
        %v373 = vadd.s32 %v368, 40
        %v374 = vadd.s32 %v368, 48
        %v375 = vadd.s32 %v368, 56
        %v376 = vadd.s32 %v368, 64
        %v377 = vadd.s32 %v368, 72
        %v378 = vadd.s32 %v368, 80
        %v379 = vadd.s32 %v368, 88
        %v380 = vadd.s32 %v368, 96
        %v381 = vadd.s32 %v368, 104
        %v382 = vadd.s32 %v368, 112
        %v383 = vadd.s32 %v368, 120
        %v384 = vstv %s366
        %v385 = vadd.s32 %v384, %v368
        %v386 = vadd.s32 %v384, %v369
        %v387 = vadd.s32 %v384, %v370
        %v388 = vadd.s32 %v384, %v371
        %v389 = vadd.s32 %v384, %v372
        %v390 = vadd.s32 %v384, %v373
        %v391 = vadd.s32 %v384, %v374
        %v392 = vadd.s32 %v384, %v375
        %v393 = vadd.s32 %v384, %v376
        %v394 = vadd.s32 %v384, %v377
        %v395 = vadd.s32 %v384, %v378
        %v396 = vadd.s32 %v384, %v379
        %v397 = vadd.s32 %v384, %v380
        %v398 = vadd.s32 %v384, %v381
        %v399 = vadd.s32 %v384, %v382
        %v400 = vadd.s32 %v384, %v383
        %vm401 = vcmp.lt.s32.totalorder %v385, 512
        %vm402 = vcmp.lt.s32.totalorder %v386, 512
        %vm403 = vcmp.lt.s32.totalorder %v387, 512
        %vm404 = vcmp.lt.s32.totalorder %v388, 512
        %vm405 = vcmp.lt.s32.totalorder %v389, 512
        %vm406 = vcmp.lt.s32.totalorder %v390, 512
        %vm407 = vcmp.lt.s32.totalorder %v391, 512
        %vm408 = vcmp.lt.s32.totalorder %v392, 512
        %vm409 = vcmp.lt.s32.totalorder %v393, 512
        %vm410 = vcmp.lt.s32.totalorder %v394, 512
        %vm411 = vcmp.lt.s32.totalorder %v395, 512
        %vm412 = vcmp.lt.s32.totalorder %v396, 512
        %vm413 = vcmp.lt.s32.totalorder %v397, 512
        %vm414 = vcmp.lt.s32.totalorder %v398, 512
        %vm415 = vcmp.lt.s32.totalorder %v399, 512
        %vm416 = vcmp.lt.s32.totalorder %v400, 512
        %v417 = vsel %vm401, %v327, -inf
        %v418 = vsel %vm402, %v329, -inf
        %v419 = vsel %vm403, %v332, -inf
        %v420 = vsel %vm404, %v334, -inf
        %v421 = vsel %vm405, %v337, -inf
        %v422 = vsel %vm406, %v339, -inf
        %v423 = vsel %vm407, %v342, -inf
        %v424 = vsel %vm408, %v344, -inf
        %v425 = vsel %vm409, %v347, -inf
        %v426 = vsel %vm410, %v349, -inf
        %v427 = vsel %vm411, %v352, -inf
        %v428 = vsel %vm412, %v354, -inf
        %v429 = vsel %vm413, %v357, -inf
        %v430 = vsel %vm414, %v359, -inf
        %v431 = vsel %vm415, %v362, -inf
        %v432 = vsel %vm416, %v364, -inf
        %v433 = vld [vmem:[#allocation2] sm:$0x1]
        %v434 = vmax.f32 %v417, %v421
        %v435 = vmax.f32 %v418, %v422
        %v436 = vmax.f32 %v419, %v423
        %v437 = vmax.f32 %v420, %v424
        %v438 = vmax.f32 %v434, %v425
        %v439 = vmax.f32 %v435, %v426
        %v440 = vmax.f32 %v436, %v427
        %v441 = vmax.f32 %v437, %v428
        %v442 = vmax.f32 %v438, %v429
        %v443 = vmax.f32 %v439, %v430
        %v444 = vmax.f32 %v440, %v431
        %v445 = vmax.f32 %v441, %v432
        %v446 = vmax.f32 %v442, %v443
        %v447 = vmax.f32 %v444, %v445
        %v448 = vmax.f32 %v446, %v447
        %v449 = vrot.slane %v448, 4
        %v450 = vmax.f32 %v448, %v449
        %v451 = vrot.slane %v450, 2
        %v452 = vmax.f32 %v450, %v451
        %v453 = vrot.slane %v452, 1
        %v454 = vmax.f32 %v452, %v453
        %v455 = vmax.f32 %v433, %v454
        %v456 = vsub.f32 %v433, %v455
        %v457 = vmul.f32 %v456, 1.442695
        %v458 = vpow.pop %v457
        %v460 = vperm.slane %v455, 0
        %v462 = vsub.f32 %v417, %v460
        %v463 = vsub.f32 %v418, %v460
        %v464 = vsub.f32 %v419, %v460
        %v465 = vsub.f32 %v420, %v460
        %v466 = vsub.f32 %v421, %v460
        %v467 = vsub.f32 %v422, %v460
        %v468 = vsub.f32 %v423, %v460
        %v469 = vsub.f32 %v424, %v460
        %v470 = vsub.f32 %v425, %v460
        %v471 = vsub.f32 %v426, %v460
        %v472 = vsub.f32 %v427, %v460
        %v473 = vsub.f32 %v428, %v460
        %v474 = vsub.f32 %v429, %v460
        %v475 = vsub.f32 %v430, %v460
        %v476 = vsub.f32 %v431, %v460
        %v477 = vsub.f32 %v432, %v460
        %v478 = vmul.f32 %v462, 1.442695
        %v479 = vpow.pop %v478
        %v480 = vmul.f32 %v463, 1.442695
        %v481 = vpow.pop %v480
        %v482 = vmul.f32 %v464, 1.442695
        %v483 = vpow.pop %v482
        %v484 = vmul.f32 %v465, 1.442695
        %v485 = vpow.pop %v484
        %v486 = vmul.f32 %v466, 1.442695
        %v487 = vpow.pop %v486
        %v488 = vmul.f32 %v467, 1.442695
        %v489 = vpow.pop %v488
        %v490 = vmul.f32 %v468, 1.442695
        %v491 = vpow.pop %v490
        %v492 = vmul.f32 %v469, 1.442695
        %v493 = vpow.pop %v492
        %v494 = vmul.f32 %v470, 1.442695
        %v495 = vpow.pop %v494
        %v496 = vmul.f32 %v471, 1.442695
        %v497 = vpow.pop %v496
        %v498 = vmul.f32 %v472, 1.442695
        %v499 = vpow.pop %v498
        %v500 = vmul.f32 %v473, 1.442695
        %v501 = vpow.pop %v500
        %v502 = vmul.f32 %v474, 1.442695
        %v503 = vpow.pop %v502
        %v504 = vmul.f32 %v475, 1.442695
        %v505 = vpow.pop %v504
        %v506 = vmul.f32 %v476, 1.442695
        %v507 = vpow.pop %v506
        %v508 = vmul.f32 %v477, 1.442695
        %v509 = vpow.pop %v508
        %v510 = vld [vmem:[#allocation3] sm:$0x1]
        %v511 = vmul.f32 %v458, %v510
        %v512 = vadd.f32 %v479, %v481
        %v513 = vadd.f32 %v512, %v483
        %v514 = vadd.f32 %v513, %v485
        %v515 = vadd.f32 %v514, %v487
        %v516 = vadd.f32 %v515, %v489
        %v517 = vadd.f32 %v516, %v491
        %v518 = vadd.f32 %v517, %v493
        %v519 = vadd.f32 %v518, %v495
        %v520 = vadd.f32 %v519, %v497
        %v521 = vadd.f32 %v520, %v499
        %v522 = vadd.f32 %v521, %v501
        %v523 = vadd.f32 %v522, %v503
        %v524 = vadd.f32 %v523, %v505
        %v525 = vadd.f32 %v524, %v507
        %v526 = vadd.f32 %v525, %v509
        %v527 = vrot.slane %v526, 4
        %v528 = vadd.f32 %v526, %v527
        %v529 = vrot.slane %v528, 2
        %v530 = vadd.f32 %v528, %v529
        %v531 = vrot.slane %v530, 1
        %v532 = vadd.f32 %v530, %v531
        %v533 = vadd.f32 %v511, %v532
        %534 = vst [vmem:[#allocation3] sm:$0x1] %v533
        %v535 = vld [vmem:[#allocation4] sm:$0xff]
        %v536 = vld [vmem:[#allocation4 + $0x8] sm:$0xff]
        %v537 = vld [vmem:[#allocation4 + $0x10] sm:$0xff]
        %v538 = vld [vmem:[#allocation4 + $0x18] sm:$0xff]
        %v540 = vperm.slane %v458, 0
        %v542 = vmul.f32 %v540, %v535
        %v543 = vmul.f32 %v540, %v536
        %v544 = vmul.f32 %v540, %v537
        %v545 = vmul.f32 %v540, %v538
        %v546 = vpack.c.bf16 %v481, %v479
        %v547 = vpack.c.bf16 %v485, %v483
        %v548 = vpack.c.bf16 %v489, %v487
        %v549 = vpack.c.bf16 %v493, %v491
        %v550 = vpack.c.bf16 %v497, %v495
        %v551 = vpack.c.bf16 %v501, %v499
        %v552 = vpack.c.bf16 %v505, %v503
        %v553 = vpack.c.bf16 %v509, %v507
        %554 = vmatpush.bf16.msra.mxu0 %v553
        %555 = vmatpush.bf16.msra.mxu0 %v552
        %556 = vmatpush.bf16.msra.mxu0 %v551
        %557 = vmatpush.bf16.msra.mxu0 %v550
        %558 = vmatpush.bf16.msra.mxu0 %v549
        %559 = vmatpush.bf16.msra.mxu0 %v548
        %560 = vmatpush.bf16.msra.mxu0 %v547
        %561 = vmatpush.bf16.msra.mxu0 %v546
        %562 = vmatmul.bf16.gmra.mxu0 %v260
        %v563 = vpop.f32.mrf.mxu0
        %v564 = vadd.f32 0.0, %v563
        %v565 = vpop.f32.mrf.mxu0
        %v566 = vadd.f32 0.0, %v565
        %567 = vmatmul.bf16.gmra.mxu0 %v261
        %v568 = vpop.f32.mrf.mxu0
        %v569 = vadd.f32 0.0, %v568
        %v570 = vpop.f32.mrf.mxu0
        %v571 = vadd.f32 0.0, %v570
        %572 = vdwg.mxu0
        %v573 = vadd.f32 %v542, %v564
        %v574 = vadd.f32 %v543, %v566
        %v575 = vadd.f32 %v544, %v569
        %v576 = vadd.f32 %v545, %v571
        %577 = vst [vmem:[#allocation4] sm:$0xff] %v573
        %578 = vst [vmem:[#allocation4 + $0x8] sm:$0xff] %v574
        %579 = vst [vmem:[#allocation4 + $0x10] sm:$0xff] %v575
        %580 = vst [vmem:[#allocation4 + $0x18] sm:$0xff] %v576
        %581 = vst [vmem:[#allocation2] sm:$0x1] %v455
        %p582 = scmp.eq.s32.totalorder %s29, 3
        // Predicated region
        $region41: #{tpu_custom_call.1} parent=27 // pred_check
          %p583 = pneg %p582
        $region42: #{tpu_custom_call.1} parent=27 // pred_check_branch
          %585 = sbr.rel (%p583) target = $region44
        $region43: #{tpu_custom_call.1} parent=27 // pred_region
          %v586 = vld [vmem:[#allocation3] sm:$0x1]
          %v587 = vrcp.pop %v586
          %v588 = vld [vmem:[#allocation4] sm:$0xff]
          %v589 = vld [vmem:[#allocation4 + $0x8] sm:$0xff]
          %v590 = vld [vmem:[#allocation4 + $0x10] sm:$0xff]
          %v591 = vld [vmem:[#allocation4 + $0x18] sm:$0xff]
          %v593 = vperm.slane %v587, 0
          %v595 = vmul.f32 %v588, %v593
          %v596 = vmul.f32 %v589, %v593
          %v597 = vmul.f32 %v590, %v593
          %v598 = vmul.f32 %v591, %v593
          %599 = vst [vmem:[%s232] sm:$0xff] %v595
          %600 = vst [vmem:[%s232 + $0x8] sm:$0xff] %v596
          %601 = vst [vmem:[%s232 + $0x10] sm:$0xff] %v597
          %602 = vst [vmem:[%s232 + $0x18] sm:$0xff] %v598
        $region44: #{tpu_custom_call.1} parent=27 // pred_fallthru
          _
        %s603 = sand.u32 %s107, 1
        %s604 = scalar_lea.sflag [#allocation7], %s603
        %s605 = sand.u32 %s107, 1
        %s606 = smul.addr %s605, 32
        %s607 = scalar_lea.vmem [#allocation10], %s606
        // Predicated region
        $region45: #{tpu_custom_call.1} parent=27 // pred_check
          %p608 = pneg %p117
        $region46: #{tpu_custom_call.1} parent=27 // pred_check_branch
          %610 = sbr.rel (%p608) target = $region48
        $region47: #{tpu_custom_call.1} parent=27 // pred_region
          %612 = vsyncadd %s604, 0
          %s613 = smul.addr %s27, 8
          %s614 = sadd.s32 %s28, %s613
          %s615 = smul.addr %s614, 8
          %s616 = scalar_lea.hbm %s2, %s615
          %s617 = sshll.u32 %s607, 4
          %s618 = int_to_ptr.vmem [resolvable:$true] %s617
          %s619 = sshll.u32 %s616, 4
          %s620 = int_to_ptr.hbm [resolvable:$true] %s619
          %625 = dma.vmem_to_hbm [thread:$0]  %s618, 512, %s620, %s604, 128, 256, 8
        $region48: #{tpu_custom_call.1} parent=27 // pred_fallthru
          _
      $region28: #{tpu_custom_call.1} parent=5 // pred_fallthru
        _
      %p626 = scmp.le.s32.totalorder 2, %s17
      // Predicated region
      $region49: #{tpu_custom_call.1} parent=5 // pred_check
        %p627 = pneg %p626
      $region50: #{tpu_custom_call.1} parent=5 // pred_check_branch
        %629 = sbr.rel (%p627) target = $region52
      $region51: #{tpu_custom_call.1} parent=5 // pred_region
        %s630 = ssub.s32 %s17, 2
        // Predicated region
        $region53: #{tpu_custom_call.1} parent=51 // pred_check
          %p631 = pneg %p123
        $region54: #{tpu_custom_call.1} parent=51 // pred_check_branch
          %633 = sbr.rel (%p631) target = $region56
        $region55: #{tpu_custom_call.1} parent=51 // pred_region
          %s634 = sand.u32 %s108, 1
          %s635 = scalar_lea.sflag [#allocation7], %s634
          %s636 = sand.u32 %s108, 1
          %s637 = smul.addr %s636, 32
          %s638 = scalar_lea.vmem [#allocation10], %s637
          %640 = dma.done %s635, 512
        $region56: #{tpu_custom_call.1} parent=51 // pred_fallthru
          _
      $region52: #{tpu_custom_call.1} parent=5 // pred_fallthru
        _
    $region6: #{tpu_custom_call.1} parent=1 // loop_footer
      %s21 = sadd.s32 1, %s17
    $region7: #{tpu_custom_call.1} parent=1 // loop_footer_branch
      %16 = sbr.rel target = $region3
    $region8: #{tpu_custom_call.1} parent=1 // loop_exit
      _
    %641 = vsyncpa [#allocation6], 1
    %s642 = scalar_lea.sflag [#allocation6], 1
    %643 = vsyncpa %s642, 1
    %644 = vsyncpa [#allocation9], 1
    %s645 = scalar_lea.sflag [#allocation9], 1
    %646 = vsyncpa %s645, 1
    %647 = vsyncpa [#allocation7], 1
    %s648 = scalar_lea.sflag [#allocation7], 1
    %649 = vsyncpa %s648, 1

</llo_original>
